<compile_context>
chip_gen: v7x
topology: tpu7x:2x2x1
jax: 0.10.0
libtpu: 0.0.40
codegen_flags: <defaults>
</compile_context>

<pallas_src>
import functools

import jax
import jax.numpy as jnp
from jax.experimental import pallas as pl
from jax.experimental.pallas import tpu as pltpu

_LANE = 128


def _round_up(x, m):
    return ((x + m - 1) // m) * m


def _pad_rows(x, m_pad):
    m = x.shape[0]
    if m == m_pad:
        return x
    return jnp.pad(x, ((0, m_pad - m),) + ((0, 0),) * (x.ndim - 1))


# -------------------- hardware-dependent knobs (v5e/v6e/v7x) ----------------

def _tpu_vmem_capacity_bytes():
    try:
        info = pltpu.get_tpu_info()
        cap = getattr(info, "vmem_capacity_bytes", None)
        if cap:
            return int(cap)
    except Exception:
        pass
    return 128 * 1024 * 1024          # v5e / v6e default


_VMEM_CAP = _tpu_vmem_capacity_bytes()
_VMEM_LIMIT = int(_VMEM_CAP * 3 // 4)     # leave headroom for compiler scratch


def _pick_tile_m(M):
    # 512-row tiles on 128 MiB parts (v5e/v6e), 256 on v7x's 64 MiB VMEM.
    cap_tile = 512 if _VMEM_CAP >= 100 * 1024 * 1024 else 256
    # ensure >= 2 grid steps when M allows (megacore / v7x dual-TC), min 16 rows
    # (bf16-friendly sublane multiple).
    half = _round_up(pl.cdiv(M, 2), 16)
    return max(16, min(cap_tile, half))


# --------------- single-buffering of block-invariant operands ---------------

_single_buffer_ok = None


def _check_single_buffer_support():
    if not hasattr(pl, "Buffered"):
        return False

    def _copy(x_ref, o_ref):
        o_ref[...] = x_ref[...]

    try:
        fn = pl.pallas_call(
            _copy,
            grid=(2,),
            in_specs=[pl.BlockSpec((8, 128), lambda i: (0, 0),
                                   pipeline_mode=pl.Buffered(1))],
            out_specs=pl.BlockSpec((8, 128), lambda i: (i, 0)),
            out_shape=jax.ShapeDtypeStruct((16, 128), jnp.float32))
        jax.block_until_ready(fn(jnp.zeros((8, 128), jnp.float32)))
        return True
    except Exception:
        return False


def _single_buffer_supported():
    global _single_buffer_ok
    if _single_buffer_ok is None:
        _single_buffer_ok = _check_single_buffer_support()
    return _single_buffer_ok


def _const_spec(shape):
    """Spec for a block-invariant operand (weights/biases): single-buffered."""
    idx = lambda i: (0, 0)
    if _single_buffer_supported():
        return pl.BlockSpec(shape, idx, pipeline_mode=pl.Buffered(1))
    return pl.BlockSpec(shape, idx)


# ----------------------------- Pallas kernels ------------------------------

def _qkv_rope_lr_kernel(x_ref, cos_ref, sin_ref, w_ref, blr_ref,
                        xq_ref, xk_ref, xv_ref, lr_ref):
    x = x_ref[...]                                     # (tm, C) bf16
    tm, C = x.shape
    D = cos_ref.shape[1]
    H = C // D

    # one fused MXU matmul for q|k|v|lr, f32 accumulation
    acc = jnp.dot(x, w_ref[...], preferred_element_type=jnp.float32)  # (tm,3C+LRP)

    # expand narrow per-row cos/sin (tm, D) over heads -> (tm, C); hoisted once
    cos_d = cos_ref[...].astype(jnp.float32)
    sin_d = sin_ref[...].astype(jnp.float32)
    if H > 1:
        cos = jnp.concatenate([cos_d] * H, axis=-1)
        sin = jnp.concatenate([sin_d] * H, axis=-1)
    else:
        cos, sin = cos_d, sin_d

    lane = jax.lax.broadcasted_iota(jnp.int32, (tm, C), 1)
    even = (lane % 2) == 0

    def rope(y):
        # Interleaved RoPE (== torch permute_qk -> apply_rotary -> undo_permute):
        #   out[2a]   = y[2a]   * cos_a - y[2a+1] * sin_a
        #   out[2a+1] = y[2a+1] * cos_a + y[2a]   * sin_a
        # partner[i] = y[i+1] (even lanes) / y[i-1] (odd lanes); the +/- sign is
        # folded into sin. pltpu.roll: roll(y, s)[i] == y[(i - s) % C].
        nxt = pltpu.roll(y, C - 1, axis=1)             # y[i+1]
        prv = pltpu.roll(y, 1, axis=1)                 # y[i-1]
        partner = jnp.where(even, nxt, prv)
        return y * cos + partner * sin

    xq = acc[:, 0:C]
    xk = acc[:, C:2 * C]
    xv = acc[:, 2 * C:3 * C]
    lr = acc[:, 3 * C:] + blr_ref[...]

    xq_ref[...] = rope(xq).astype(xq_ref.dtype)
    xk_ref[...] = rope(xk).astype(xk_ref.dtype)
    xv_ref[...] = xv.astype(xv_ref.dtype)
    lr_ref[...] = jax.nn.sigmoid(lr).astype(lr_ref.dtype)


def qkv_rope_lr(x2d, cos2d, sin2d, prep, num_heads):
    """Fused q/k/v/lr projection (single matmul) + interleaved RoPE."""
    M, C = x2d.shape
    D = cos2d.shape[1]
    WN = prep["w_qkvlr"].shape[1]
    LRP = prep["blr_pad"].shape[1]
    tm = _pick_tile_m(M)
    m_pad = pl.cdiv(M, tm) * tm
    x_p = _pad_rows(x2d.astype(jnp.bfloat16), m_pad)   # no-op when M % tm == 0
    cos_p = _pad_rows(cos2d, m_pad)
    sin_p = _pad_rows(sin2d, m_pad)

    row_c = pl.BlockSpec((tm, C), lambda i: (i, 0))
    row_d = pl.BlockSpec((tm, D), lambda i: (i, 0))
    row_lr = pl.BlockSpec((tm, LRP), lambda i: (i, 0))

    xq, xk, xv, lr = pl.pallas_call(
        _qkv_rope_lr_kernel,
        grid=(m_pad // tm,),
        in_specs=[row_c, row_d, row_d,
                  _const_spec((C, WN)), _const_spec((1, LRP))],
        out_specs=[row_c, row_c, row_c, row_lr],
        out_shape=[jax.ShapeDtypeStruct((m_pad, C), jnp.bfloat16),
                   jax.ShapeDtypeStruct((m_pad, C), jnp.bfloat16),
                   jax.ShapeDtypeStruct((m_pad, C), jnp.bfloat16),
                   jax.ShapeDtypeStruct((m_pad, LRP), jnp.bfloat16)],
        compiler_params=pltpu.CompilerParams(
            dimension_semantics=("parallel",),
            vmem_limit_bytes=_VMEM_LIMIT),
    )(x_p, cos_p, sin_p, prep["w_qkvlr"], prep["blr_pad"])
    return xq[:M], xk[:M], xv[:M], lr[:M, :num_heads]


def _norm_oproj_kernel(y_ref, g_ref, b_ref, wo_ref, out_ref, *, eps):
    y = y_ref[...].astype(jnp.float32)
    mean = jnp.mean(y, axis=-1, keepdims=True)
    var = jnp.mean(jnp.square(y - mean), axis=-1, keepdims=True)
    yn = (y - mean) * jax.lax.rsqrt(var + eps)
    yn = yn * g_ref[...] + b_ref[...]
    out_ref[...] = jnp.dot(yn.astype(wo_ref.dtype), wo_ref[...],
                           preferred_element_type=jnp.float32)


def norm_oproj(y2d, prep, p_out, *, eps=1e-6):
    """post_norm (LayerNorm eps=1e-6) + o_proj, fused; y2d may be bf16."""
    M, C = y2d.shape
    PP = prep["wo_pad"].shape[1]
    tm = _pick_tile_m(M)
    m_pad = pl.cdiv(M, tm) * tm
    y_p = _pad_rows(y2d, m_pad)
    out = pl.pallas_call(
        functools.partial(_norm_oproj_kernel, eps=eps),
        grid=(m_pad // tm,),
        in_specs=[pl.BlockSpec((tm, C), lambda i: (i, 0)),
                  _const_spec((1, C)), _const_spec((1, C)),
                  _const_spec((C, PP))],
        out_specs=pl.BlockSpec((tm, PP), lambda i: (i, 0)),
        out_shape=jax.ShapeDtypeStruct((m_pad, PP), jnp.float32),
        compiler_params=pltpu.CompilerParams(
            dimension_semantics=("parallel",),
            vmem_limit_bytes=_VMEM_LIMIT),
    )(y_p, prep["gamma"], prep["beta"], prep["wo_pad"])
    return out[:M, :p_out]


# ------------------- one-time parameter prep (no per-call .T) ---------------

def prepare_kernel_params(params, cfg):
    C, H, P = cfg["hidden_size"], cfg["num_heads"], cfg["output_proj_dim"]
    LRP = _round_up(H, _LANE)
    PP = _round_up(P, _LANE)
    wlr = params["learnable_ttt_lr_weight"][:, 0, :].T               # (C, H)
    wlr_pad = jnp.zeros((C, LRP), jnp.float32).at[:, :H].set(wlr)
    # fused weight: x @ [Wq^T | Wk^T | Wv^T | Wlr_pad]  -> one MXU stream
    w_cat = jnp.concatenate(
        [params["wq"].T, params["wk"].T, params["wv"].T, wlr_pad],
        axis=1).astype(jnp.bfloat16)                                 # (C, 3C+LRP)
    blr = params["learnable_ttt_lr_bias"][:, 0]                      # (H,)
    blr_pad = jnp.zeros((1, LRP), jnp.float32).at[0, :H].set(blr)
    wo_pad = jnp.zeros((C, PP), jnp.float32).at[:, :P].set(params["wo"].T)
    return {
        "w_qkvlr": w_cat,
        "blr_pad": blr_pad,
        "wo_pad": wo_pad.astype(jnp.bfloat16),
        "gamma": params["post_norm_w"][None, :].astype(jnp.float32),
        "beta": params["post_norm_b"][None, :].astype(jnp.float32),
    }


# --------------------------- RoPE coefficients (glue) -----------------------

def rope_coefficients(position_ids, mini_batch_size, head_dim, base):
    # Narrow (M, head_dim) bf16 tables in the interleaved basis, rotation sign
    # folded into sin; the kernel tiles them across heads in-VMEM.
    pos = (position_ids % mini_batch_size).astype(jnp.float32).reshape(-1)
    inv_freq = 1.0 / (base ** (jnp.arange(0, head_dim, 2, dtype=jnp.float32)
                               / head_dim))
    ang = pos[:, None] * inv_freq[None, :]                           # (M, D/2)
    cos = jnp.repeat(jnp.cos(ang), 2, axis=-1)                       # (M, D)
    sin = jnp.repeat(jnp.sin(ang), 2, axis=-1)                       # (M, D)
    sign = jnp.tile(jnp.array([-1.0, 1.0], jnp.float32), head_dim // 2)
    sin = sin * sign[None, :]
    return cos.astype(jnp.bfloat16), sin.astype(jnp.bfloat16)


# ----------------------------- TTTBase forward ------------------------------

def get_eta(ttt_lr_sig, params, cfg, mini_batch_step_offset, mini_batch_size):
    # ttt_lr_sig: (B, n, k, H) = sigmoid(X @ W_lr + b_lr) from the fused kernel.
    B, n, k, H = ttt_lr_sig.shape
    D = cfg["head_dim"]
    ttt_lr = ttt_lr_sig.astype(jnp.float32).transpose(0, 3, 1, 2)[..., None]
    ttt_lr = jnp.swapaxes(ttt_lr, -1, -2)                            # (B,H,n,1,k)
    ttt_lr_eta = cfg["ttt_base_lr"] * ttt_lr / D
    token_idx = params["token_idx"] + params["learnable_token_idx"]
    token_idx = token_idx[mini_batch_step_offset:
                          mini_batch_step_offset + mini_batch_size]
    token_idx = jnp.maximum(token_idx, 0.0)
    token_eta = jnp.broadcast_to(
        token_idx.reshape(1, 1, 1, mini_batch_size, 1),
        (B, H, n, mini_batch_size, 1))
    return token_eta, ttt_lr_eta


def get_ttt_inputs(XQ, XK, XV, lr_chunk, mini_batch_size, params, cfg):
    # XQ/XK/XV kept in (B, Lc, H*D) row-major layout (no head-transpose copies);
    # a real ttt kernel would select heads via BlockSpec column offsets.
    B, Lc, C = XQ.shape
    n = Lc // mini_batch_size
    lr = lr_chunk.reshape(B, n, mini_batch_size, -1)                 # (B,n,k,H)
    token_eta, ttt_lr_eta = get_eta(lr, params, cfg, 0, mini_batch_size)
    eta = token_eta * ttt_lr_eta
    return {"XQ": XQ.reshape(B, n, mini_batch_size, C),
            "XK": XK.reshape(B, n, mini_batch_size, C),
            "XV": XV.reshape(B, n, mini_batch_size, C),
            "eta": eta, "token_eta": token_eta, "ttt_lr_eta": ttt_lr_eta}


def ttt_placeholder(inputs, mini_batch_size, last_mini_batch_params_dict):
    # TODO(synk): TTTBase.ttt is abstract (raises NotImplementedError in the
    # reference); passthrough of the roped queries merged back to (B, Lc, width).
    XQ = inputs["XQ"]                                  # (B, n, k, C)
    B, n, k, C = XQ.shape
    return XQ.reshape(B, n * k, C), last_mini_batch_params_dict


def ttt_base_forward(prep, params, hidden_states, position_ids, cfg):
    B, L, C = hidden_states.shape
    mbs = cfg["mini_batch_size"]
    H, D, P = cfg["num_heads"], cfg["head_dim"], cfg["output_proj_dim"]
    reminder_len = L % mbs
    num_mini_batch = L // mbs
    M = B * L

    # fused q/k/v/lr projections + RoPE (Pallas); narrow cos/sin tables
    cos2d, sin2d = rope_coefficients(position_ids, mbs, D, cfg["rope_theta"])
    XQ2d, XK2d, XV2d, lr2d = qkv_rope_lr(hidden_states.reshape(M, C),
                                         cos2d, sin2d, prep, H)
    # keep (B, L, H*D) layout end-to-end: no (B,H,L,D) transpose round-trips
    XQ = XQ2d.reshape(B, L, C)
    XK = XK2d.reshape(B, L, C)
    XV = XV2d.reshape(B, L, C)
    lr_full = lr2d.reshape(B, L, H)                    # sigmoid lr gate (bf16)

    output_hidden_states = []
    last_params = None
    if num_mini_batch > 0:
        Lm = num_mini_batch * mbs
        ttt_in = get_ttt_inputs(XQ[:, :Lm], XK[:, :Lm], XV[:, :Lm],
                                lr_full[:, :Lm], mbs, params, cfg)
        out_mod, last_params = ttt_placeholder(ttt_in, mbs, last_params)
        output_hidden_states.append(out_mod)
    if reminder_len > 0:
        ttt_in = get_ttt_inputs(XQ[:, -reminder_len:], XK[:, -reminder_len:],
                                XV[:, -reminder_len:],
                                lr_full[:, -reminder_len:],
                                reminder_len, params, cfg)
        out_rem, _ = ttt_placeholder(ttt_in, reminder_len, last_params)
        output_hidden_states.append(out_rem)
    if len(output_hidden_states) == 1:
        out = output_hidden_states[0]                  # (B, L, C) bf16
    else:
        out = jnp.concatenate(output_hidden_states, axis=1)

    # TODO(synk): config.use_gate / g_proj gelu-gate branch not implemented
    # (TTTConfig default use_gate=False).

    # post LayerNorm (eps=1e-6, as in the reference post_norm) + o_proj (fused).
    final = norm_oproj(out.reshape(M, C), prep, P, eps=1e-6)
    return final.reshape(B, L, P)


# --------------------------------- driver -----------------------------------

if __name__ == "__main__":
    # small but lane-friendly TTTConfig-consistent sizes (C = H * D)
    cfg = dict(hidden_size=128, num_heads=4, head_dim=32, mini_batch_size=4,
               output_proj_dim=128, rope_theta=10000.0, ttt_base_lr=1.0)
    B, L, C = 2, 8, cfg["hidden_size"]
    H, D, P = cfg["num_heads"], cfg["head_dim"], cfg["output_proj_dim"]

    key = jax.random.PRNGKey(0)
    ks = jax.random.split(key, 8)
    std = 0.02
    params = {
        "wq": jax.random.normal(ks[0], (C, C), jnp.float32) * std,   # (out, in)
        "wk": jax.random.normal(ks[1], (C, C), jnp.float32) * std,
        "wv": jax.random.normal(ks[2], (C, C), jnp.float32) * std,
        "wo": jax.random.normal(ks[3], (P, C), jnp.float32) * std,   # (out, in)
        "learnable_ttt_lr_weight": jax.random.normal(ks[4], (H, 1, C),
                                                     jnp.float32) * std,
        "learnable_ttt_lr_bias": jnp.zeros((H, 1), jnp.float32),
        "learnable_token_idx": jnp.zeros((cfg["mini_batch_size"],), jnp.float32),
        "token_idx": 1.0 / jnp.arange(1, cfg["mini_batch_size"] + 1,
                                      dtype=jnp.float32),
        "post_norm_w": jnp.ones((C,), jnp.float32),
        "post_norm_b": jnp.zeros((C,), jnp.float32),
    }
    prep = prepare_kernel_params(params, cfg)    # one-time concat/pad/bf16

    hidden_states = jax.random.normal(ks[5], (B, L, C), jnp.float32)
    position_ids = jnp.broadcast_to(jnp.arange(L, dtype=jnp.int32)[None, :],
                                    (B, L))

    out = ttt_base_forward(prep, params, hidden_states, position_ids, cfg)
    jax.block_until_ready(out)
    assert out.shape == (B, L, P)
    print("KERNEL_OK")
</pallas_src>

<mosaic_0001>
module attributes {stable_mosaic.version = 11 : i64} {
  func.func @_copy(%arg0: i32, %arg1: memref<8x128xf32, #tpu.memory_space<vmem>>, %arg2: memref<8x128xf32, #tpu.memory_space<vmem>>) attributes {dimension_semantics = [#tpu.dimension_semantics<arbitrary>], iteration_bounds = array<i64: 2>, scalar_prefetch = 0 : i64, scratch_operands = 0 : i64, tpu.core_type = #tpu.core_type<tc>, window_params = [{pipeline_mode = #tpu.pipeline_mode<synchronous>, transform_indices = @transform_0, window_bounds = array<i64: 8, 128>}, {transform_indices = @transform_1, window_bounds = array<i64: 8, 128>}]} {
    %c0 = arith.constant 0 : index
    %c0_0 = arith.constant 0 : index
    %0 = vector.load %arg1[%c0, %c0_0] : memref<8x128xf32, #tpu.memory_space<vmem>>, vector<8x128xf32>
    %c0_1 = arith.constant 0 : index
    %c0_2 = arith.constant 0 : index
    %1 = vector.load %arg2[%c0_1, %c0_2] : memref<8x128xf32, #tpu.memory_space<vmem>>, vector<8x128xf32>
    tpu.vector_store %arg2[%c0_1, %c0_2], %0 {strides = array<i32>} : memref<8x128xf32, #tpu.memory_space<vmem>>, vector<8x128xf32>,
    return
  }
  func.func @transform_0(%arg0: i32) -> (i32, i32) {
    %c0_i32 = arith.constant 0 : i32
    %c0_i32_0 = arith.constant 0 : i32
    %c0_i32_1 = arith.constant 0 : i32
    return %c0_i32, %c0_i32_0 : i32, i32
  }
  func.func @transform_1(%arg0: i32) -> (i32, i32) {
    %c0_i32 = arith.constant 0 : i32
    %c0_i32_0 = arith.constant 0 : i32
    return %arg0, %c0_i32 : i32, i32
  }
}

module attributes {stable_mosaic.version = 11 : i64} {
  func.func @_qkv_rope_lr_kernel(%arg0: i32, %arg1: memref<16x128xbf16, #tpu.memory_space<vmem>>, %arg2: memref<16x32xbf16, #tpu.memory_space<vmem>>, %arg3: memref<16x32xbf16, #tpu.memory_space<vmem>>, %arg4: memref<128x512xbf16, #tpu.memory_space<vmem>>, %arg5: memref<1x128xf32, #tpu.memory_space<vmem>>, %arg6: memref<16x128xbf16, #tpu.memory_space<vmem>>, %arg7: memref<16x128xbf16, #tpu.memory_space<vmem>>, %arg8: memref<16x128xbf16, #tpu.memory_space<vmem>>, %arg9: memref<16x128xbf16, #tpu.memory_space<vmem>>) attributes {dimension_semantics = [#tpu.dimension_semantics<parallel>], iteration_bounds = array<i64: 1>, scalar_prefetch = 0 : i64, scratch_operands = 0 : i64, tpu.core_type = #tpu.core_type<tc>, window_params = [{transform_indices = @transform_0, window_bounds = array<i64: 16, 128>}, {transform_indices = @transform_1, window_bounds = array<i64: 16, 32>}, {transform_indices = @transform_2, window_bounds = array<i64: 16, 32>}, {pipeline_mode = #tpu.pipeline_mode<synchronous>, transform_indices = @transform_3, window_bounds = array<i64: 128, 512>}, {pipeline_mode = #tpu.pipeline_mode<synchronous>, transform_indices = @transform_4, window_bounds = array<i64: 1, 128>}, {transform_indices = @transform_5, window_bounds = array<i64: 16, 128>}, {transform_indices = @transform_6, window_bounds = array<i64: 16, 128>}, {transform_indices = @transform_7, window_bounds = array<i64: 16, 128>}, {transform_indices = @transform_8, window_bounds = array<i64: 16, 128>}]} {
    %c0 = arith.constant 0 : index
    %c0_0 = arith.constant 0 : index
    %0 = vector.load %arg1[%c0, %c0_0] : memref<16x128xbf16, #tpu.memory_space<vmem>>, vector<16x128xbf16>
    %c0_1 = arith.constant 0 : index
    %c0_2 = arith.constant 0 : index
    %1 = vector.load %arg4[%c0_1, %c0_2] : memref<128x512xbf16, #tpu.memory_space<vmem>>, vector<128x512xbf16>
    %cst = arith.constant dense<0.000000e+00> : vector<16x512xf32>
    %2 = tpu.matmul %0, %1, %cst {dimension_numbers = #tpu.dot_dimension_numbers<[1], [0], [0], [1], [0, 0, 1, 1], [], []>} : vector<16x128xbf16>, vector<128x512xbf16>, vector<16x512xf32> -> vector<16x512xf32>
    %c0_3 = arith.constant 0 : index
    %c0_4 = arith.constant 0 : index
    %3 = vector.load %arg2[%c0_3, %c0_4] : memref<16x32xbf16, #tpu.memory_space<vmem>>, vector<16x32xbf16>
    %4 = arith.extf %3 : vector<16x32xbf16> to vector<16x32xf32>
    %c0_5 = arith.constant 0 : index
    %c0_6 = arith.constant 0 : index
    %5 = vector.load %arg3[%c0_5, %c0_6] : memref<16x32xbf16, #tpu.memory_space<vmem>>, vector<16x32xbf16>
    %6 = arith.extf %5 : vector<16x32xbf16> to vector<16x32xf32>
    %7 = tpu.concatenate %4, %4, %4, %4 in 1 : vector<16x32xf32>, vector<16x32xf32>, vector<16x32xf32>, vector<16x32xf32> -> vector<16x128xf32>
    %8 = tpu.concatenate %6, %6, %6, %6 in 1 : vector<16x32xf32>, vector<16x32xf32>, vector<16x32xf32>, vector<16x32xf32> -> vector<16x128xf32>
    %9 = tpu.iota {dimensions = array<i32: 1>} : vector<16x128xi32>
    %c2_i32 = arith.constant 2 : i32
    %c0_i32 = arith.constant 0 : i32
    %10 = arith.cmpi eq, %c2_i32, %c0_i32 : i32
    %c1_i32 = arith.constant 1 : i32
    %11 = arith.select %10, %c1_i32, %c2_i32 : i32
    %12 = vector.broadcast %11 : i32 to vector<16x128xi32>
    %13 = arith.remsi %9, %12 : vector<16x128xi32>
    %c0_i32_7 = arith.constant 0 : i32
    %14 = vector.broadcast %c0_i32_7 : i32 to vector<16x128xi32>
    %15 = arith.cmpi ne, %13, %14 : vector<16x128xi32>
    %c0_i32_8 = arith.constant 0 : i32
    %16 = vector.broadcast %c0_i32_8 : i32 to vector<16x128xi32>
    %17 = arith.cmpi slt, %13, %16 : vector<16x128xi32>
    %c0_i32_9 = arith.constant 0 : i32
    %18 = arith.cmpi slt, %11, %c0_i32_9 : i32
    %19 = vector.broadcast %18 : i1 to vector<16x128xi1>
    %20 = vector.broadcast %19 : vector<16x128xi1> to vector<16x128xi1>
    %21 = arith.xori %17, %20 : vector<16x128xi1>
    %22 = arith.andi %21, %15 : vector<16x128xi1>
    %23 = vector.broadcast %11 : i32 to vector<16x128xi32>
    %24 = arith.addi %13, %23 : vector<16x128xi32>
    %25 = arith.select %22, %24, %13 : vector<16x128xi1>, vector<16x128xi32>
    %c0_i32_10 = arith.constant 0 : i32
    %26 = vector.broadcast %c0_i32_10 : i32 to vector<16x128xi32>
    %27 = arith.cmpi eq, %25, %26 : vector<16x128xi32>
    %28 = vector.extract_strided_slice %2 {offsets = [0, 0], sizes = [16, 128], strides = [1, 1]} : vector<16x512xf32> to vector<16x128xf32>
    %29 = vector.extract_strided_slice %2 {offsets = [0, 128], sizes = [16, 128], strides = [1, 1]} : vector<16x512xf32> to vector<16x128xf32>
    %30 = vector.extract_strided_slice %2 {offsets = [0, 256], sizes = [16, 128], strides = [1, 1]} : vector<16x512xf32> to vector<16x128xf32>
    %31 = vector.extract_strided_slice %2 {offsets = [0, 384], sizes = [16, 128], strides = [1, 1]} : vector<16x512xf32> to vector<16x128xf32>
    %c0_11 = arith.constant 0 : index
    %c0_12 = arith.constant 0 : index
    %32 = vector.load %arg5[%c0_11, %c0_12] : memref<1x128xf32, #tpu.memory_space<vmem>>, vector<1x128xf32>
    %33 = vector.broadcast %32 : vector<1x128xf32> to vector<16x128xf32>
    %34 = arith.addf %31, %33 : vector<16x128xf32>
    %c127_i32 = arith.constant 127 : i32
    %35 = tpu.dynamic_rotate %28 by %c127_i32 dim 1 : vector<16x128xf32>, i32 -> vector<16x128xf32>
    %c1_i32_13 = arith.constant 1 : i32
    %36 = tpu.dynamic_rotate %28 by %c1_i32_13 dim 1 : vector<16x128xf32>, i32 -> vector<16x128xf32>
    %37 = arith.select %27, %35, %36 : vector<16x128xi1>, vector<16x128xf32>
    %38 = arith.mulf %28, %7 : vector<16x128xf32>
    %39 = arith.mulf %37, %8 : vector<16x128xf32>
    %40 = arith.addf %38, %39 : vector<16x128xf32>
    %41 = arith.truncf %40 : vector<16x128xf32> to vector<16x128xbf16>
    %c0_14 = arith.constant 0 : index
    %c0_15 = arith.constant 0 : index
    %42 = vector.load %arg6[%c0_14, %c0_15] : memref<16x128xbf16, #tpu.memory_space<vmem>>, vector<16x128xbf16>
    tpu.vector_store %arg6[%c0_14, %c0_15], %41 {strides = array<i32>} : memref<16x128xbf16, #tpu.memory_space<vmem>>, vector<16x128xbf16>,
    %c127_i32_16 = arith.constant 127 : i32
    %43 = tpu.dynamic_rotate %29 by %c127_i32_16 dim 1 : vector<16x128xf32>, i32 -> vector<16x128xf32>
    %c1_i32_17 = arith.constant 1 : i32
    %44 = tpu.dynamic_rotate %29 by %c1_i32_17 dim 1 : vector<16x128xf32>, i32 -> vector<16x128xf32>
    %45 = arith.select %27, %43, %44 : vector<16x128xi1>, vector<16x128xf32>
    %46 = arith.mulf %29, %7 : vector<16x128xf32>
    %47 = arith.mulf %45, %8 : vector<16x128xf32>
    %48 = arith.addf %46, %47 : vector<16x128xf32>
    %49 = arith.truncf %48 : vector<16x128xf32> to vector<16x128xbf16>
    %c0_18 = arith.constant 0 : index
    %c0_19 = arith.constant 0 : index
    %50 = vector.load %arg7[%c0_18, %c0_19] : memref<16x128xbf16, #tpu.memory_space<vmem>>, vector<16x128xbf16>
    tpu.vector_store %arg7[%c0_18, %c0_19], %49 {strides = array<i32>} : memref<16x128xbf16, #tpu.memory_space<vmem>>, vector<16x128xbf16>,
    %51 = arith.truncf %30 : vector<16x128xf32> to vector<16x128xbf16>
    %c0_20 = arith.constant 0 : index
    %c0_21 = arith.constant 0 : index
    %52 = vector.load %arg8[%c0_20, %c0_21] : memref<16x128xbf16, #tpu.memory_space<vmem>>, vector<16x128xbf16>
    tpu.vector_store %arg8[%c0_20, %c0_21], %51 {strides = array<i32>} : memref<16x128xbf16, #tpu.memory_space<vmem>>, vector<16x128xbf16>,
    %53 = arith.negf %34 : vector<16x128xf32>
    %54 = math.exp %53 : vector<16x128xf32>
    %cst_22 = arith.constant 1.000000e+00 : f32
    %55 = vector.broadcast %cst_22 : f32 to vector<16x128xf32>
    %56 = arith.addf %55, %54 : vector<16x128xf32>
    %57 = arith.divf %55, %56 : vector<16x128xf32>
    %58 = arith.truncf %57 : vector<16x128xf32> to vector<16x128xbf16>
    %c0_23 = arith.constant 0 : index
    %c0_24 = arith.constant 0 : index
    %59 = vector.load %arg9[%c0_23, %c0_24] : memref<16x128xbf16, #tpu.memory_space<vmem>>, vector<16x128xbf16>
    tpu.vector_store %arg9[%c0_23, %c0_24], %58 {strides = array<i32>} : memref<16x128xbf16, #tpu.memory_space<vmem>>, vector<16x128xbf16>,
    return
  }
  func.func @transform_0(%arg0: i32) -> (i32, i32) {
    %c0_i32 = arith.constant 0 : i32
    %c0_i32_0 = arith.constant 0 : i32
    return %arg0, %c0_i32 : i32, i32
  }
  func.func @transform_1(%arg0: i32) -> (i32, i32) {
    %c0_i32 = arith.constant 0 : i32
    %c0_i32_0 = arith.constant 0 : i32
    return %arg0, %c0_i32 : i32, i32
  }
  func.func @transform_2(%arg0: i32) -> (i32, i32) {
    %c0_i32 = arith.constant 0 : i32
    %c0_i32_0 = arith.constant 0 : i32
    return %arg0, %c0_i32 : i32, i32
  }
  func.func @transform_3(%arg0: i32) -> (i32, i32) {
    %c0_i32 = arith.constant 0 : i32
    %c0_i32_0 = arith.constant 0 : i32
    %c0_i32_1 = arith.constant 0 : i32
    return %c0_i32, %c0_i32_0 : i32, i32
  }
  func.func @transform_4(%arg0: i32) -> (i32, i32) {
    %c0_i32 = arith.constant 0 : i32
    %c0_i32_0 = arith.constant 0 : i32
    %c0_i32_1 = arith.constant 0 : i32
    return %c0_i32, %c0_i32_0 : i32, i32
  }
  func.func @transform_5(%arg0: i32) -> (i32, i32) {
    %c0_i32 = arith.constant 0 : i32
    %c0_i32_0 = arith.constant 0 : i32
    return %arg0, %c0_i32 : i32, i32
  }
  func.func @transform_6(%arg0: i32) -> (i32, i32) {
    %c0_i32 = arith.constant 0 : i32
    %c0_i32_0 = arith.constant 0 : i32
    return %arg0, %c0_i32 : i32, i32
  }
  func.func @transform_7(%arg0: i32) -> (i32, i32) {
    %c0_i32 = arith.constant 0 : i32
    %c0_i32_0 = arith.constant 0 : i32
    return %arg0, %c0_i32 : i32, i32
  }
  func.func @transform_8(%arg0: i32) -> (i32, i32) {
    %c0_i32 = arith.constant 0 : i32
    %c0_i32_0 = arith.constant 0 : i32
    return %arg0, %c0_i32 : i32, i32
  }
}

</mosaic_0001>

<llo_original>
// kernel: tpu_custom_call.1
$region0: #{tpu_custom_call.1}
  #allocation0 [shape = 'u32[]', space=smem, size = 0x4, offset = 0x4, fixed_abs, tag = 'smem constant byte address 0x4 - core index']
  #allocation1 [shape = 'u32[144,128]{1,0:T(1,128)}', space=vmem, size = 0x12000, scoped, tag = 'internal scratch']
  %s0 = inlined_call_operand.hbm [shape: f32[8,128], index: 0, kind: input, shape index: {}]
  %s1 = inlined_call_operand.hbm [shape: f32[16,128], index: 1, kind: output, shape index: {}]
  %s2 = sld [smem:[#allocation0]]
  $region41: #{tpu_custom_call.1} parent=0
    _
  %s4 = ssub.s32 1, %s2
  %s5 = scalar_select 0, %s4, %s2
  $region1: #{tpu_custom_call.1} parent=0
    #allocation2 [shape = 'u8[4096]{0}', space=vmem, size = 0x1000, scoped, tag = 'input window, operand 0, single buffered']
    #allocation3 [shape = 's32[2]{0}', space=sflag, size = 0x8, scoped, tag = 'scoped memory for tpu_custom_call.1']
    #allocation4 [shape = 's32[2]{0}', space=sflag, size = 0x8, scoped, tag = 'scoped memory for tpu_custom_call.1']
    #allocation5 [shape = 'u8[8192]{0}', space=vmem, size = 0x2000, scoped, tag = 'output window, operand 0']
    %6 = vsyncpa [#allocation3], 0
    %7 = vsyncpa [#allocation4], 0
    %s8 = scalar_lea.sflag [#allocation4], 1
    %9 = vsyncpa %s8, 0
    loop: start=0, step=1, limit=4
    $region2: #{tpu_custom_call.1} parent=1 // loop_pre_header
      _
    $region3: #{tpu_custom_call.1} parent=1 // loop_header
      %s11 = sphi 0, %s15
      %p12 = scmp.ge.s32.totalorder %s11, 4
      %s19 = sphi 0, %s19
      %s21 = sphi 0, %s19
      %s22 = sphi 0, %s21
      %s36 = sphi 0, %s22
      %s42 = sphi 0, %s44
      %s45 = sphi 0, %s42
      %s46 = sphi 0, %s45
      %s62 = sphi 0, %s46
    $region4: #{tpu_custom_call.1} parent=1 // loop_header_branch
      %14 = sbr.rel (%p12) target = $region8
    $region5: #{tpu_custom_call.1} parent=1 // loop_body
      %s16 = ssub.s32 %s11, 1
      %s17 = ssub.s32 %s11, 2
      %s18 = sadd.s32 %s11, 1
      %s20 = sadd.s32 %s19, 1
      %p23 = scmp.eq.s32.totalorder %s11, 1
      %p24 = scmp.ne.s32.totalorder %s19, %s21
      %p25 = scmp.eq.s32.totalorder %s11, 0
      %p26 = por %p24, %p25
      %p27 = scmp.ne.s32.totalorder %s19, %s21
      %p28 = scmp.eq.s32.totalorder %s16, 1
      %p29 = por %p27, %p28
      %p30 = scmp.ne.s32.totalorder %s21, %s22
      %p31 = scmp.eq.s32.totalorder %s16, 0
      %p32 = por %p30, %p31
      %p33 = scmp.ne.s32.totalorder %s21, %s22
      %p34 = scmp.eq.s32.totalorder %s17, 1
      %p35 = por %p33, %p34
      %p37 = scmp.ne.s32.totalorder %s22, %s36
      %p38 = scmp.eq.s32.totalorder %s17, 0
      %p39 = por %p37, %p38
      %s40 = ssub.s32 %s11, %s18
      %p41 = scmp.eq.s32.totalorder %s40, 0
      %s43 = sadd.s32 %s42, 1
      %s44 = scalar_select %p41, %s42, %s43
      %p47 = pneg %p41
      %p48 = scmp.eq.s32.totalorder %s11, 1
      %p49 = por %p47, %p48
      %p50 = scmp.ne.s32.totalorder %s42, %s45
      %p51 = scmp.eq.s32.totalorder %s11, 0
      %p52 = por %p50, %p51
      %p53 = scmp.ne.s32.totalorder %s42, %s45
      %p54 = scmp.eq.s32.totalorder %s16, 1
      %p55 = por %p53, %p54
      %p56 = scmp.ne.s32.totalorder %s45, %s46
      %p57 = scmp.eq.s32.totalorder %s16, 0
      %p58 = por %p56, %p57
      %p59 = scmp.ne.s32.totalorder %s45, %s46
      %p60 = scmp.eq.s32.totalorder %s17, 1
      %p61 = por %p59, %p60
      %p63 = scmp.ne.s32.totalorder %s46, %s62
      %p64 = scmp.eq.s32.totalorder %s17, 0
      %p65 = por %p63, %p64
      %p66 = scmp.le.s32.totalorder 1, %s11
      %p67 = scmp.lt.s32.totalorder %s11, 3
      %p68 = pnand %p66, %p67
      %p69 = pneg %p68
      // Predicated region
      $region9: #{tpu_custom_call.1} parent=5 // pred_check
        _
      $region10: #{tpu_custom_call.1} parent=5 // pred_check_branch
        %71 = sbr.rel (%p68) target = $region12
      $region11: #{tpu_custom_call.1} parent=5 // pred_region
        %s72 = ssub.s32 %s11, 1
        // Predicated region
        $region13: #{tpu_custom_call.1} parent=11 // pred_check
          %p73 = pneg %p32
        $region14: #{tpu_custom_call.1} parent=11 // pred_check_branch
          %75 = sbr.rel (%p73) target = $region16
        $region15: #{tpu_custom_call.1} parent=11 // pred_region
          %s77 = ssub.s32 128, 128
          %78 = vsyncadd [#allocation3], %s77
          %s80 = sshll.u32 [#allocation2], 4
          %s81 = int_to_ptr.vmem [resolvable:$true] %s80
          %83 = dma.hbm_to_vmem [thread:$0]  %s0, 128, %s81, [#allocation3]
        $region16: #{tpu_custom_call.1} parent=11 // pred_fallthru
          _
      $region12: #{tpu_custom_call.1} parent=5 // pred_fallthru
        _
      %p84 = scmp.lt.s32.totalorder %s11, 2
      // Predicated region
      $region17: #{tpu_custom_call.1} parent=5 // pred_check
        %p85 = pneg %p84
      $region18: #{tpu_custom_call.1} parent=5 // pred_check_branch
        %87 = sbr.rel (%p85) target = $region20
      $region19: #{tpu_custom_call.1} parent=5 // pred_region
        _
      $region20: #{tpu_custom_call.1} parent=5 // pred_fallthru
        _
      %p88 = scmp.le.s32.totalorder 1, %s11
      %p89 = scmp.lt.s32.totalorder %s11, 3
      %p90 = pnand %p88, %p89
      %p91 = pneg %p90
      // Predicated region
      $region21: #{tpu_custom_call.1} parent=5 // pred_check
        _
      $region22: #{tpu_custom_call.1} parent=5 // pred_check_branch
        %93 = sbr.rel (%p90) target = $region24
      $region23: #{tpu_custom_call.1} parent=5 // pred_region
        %s94 = ssub.s32 %s11, 1
        // Predicated region
        $region25: #{tpu_custom_call.1} parent=23 // pred_check
          %p95 = pneg %p32
        $region26: #{tpu_custom_call.1} parent=23 // pred_check_branch
          %97 = sbr.rel (%p95) target = $region28
        $region27: #{tpu_custom_call.1} parent=23 // pred_region
          %98 = dma.done [#allocation3], 128
        $region28: #{tpu_custom_call.1} parent=23 // pred_fallthru
          _
        %p99 = pneg %p32
        %p100 = pneg %p29
        %p101 = pneg %p58
        %p102 = pneg %p55
        %s103 = sand.u32 %s45, 1
        %s104 = scalar_lea.sflag [#allocation4], %s103
        %s105 = sand.u32 %s45, 1
        %s106 = smul.addr %s105, 8
        %s107 = scalar_lea.vmem [#allocation5], %s106
        %v108 = vld [vmem:[#allocation2] sm:$0xff]
        %109 = vst [vmem:[%s107] sm:$0xff] %v108
        %s110 = sand.u32 %s45, 1
        %s111 = scalar_lea.sflag [#allocation4], %s110
        %s112 = sand.u32 %s45, 1
        %s113 = smul.addr %s112, 8
        %s114 = scalar_lea.vmem [#allocation5], %s113
        // Predicated region
        $region29: #{tpu_custom_call.1} parent=23 // pred_check
          %p115 = pneg %p55
        $region30: #{tpu_custom_call.1} parent=23 // pred_check_branch
          %117 = sbr.rel (%p115) target = $region32
        $region31: #{tpu_custom_call.1} parent=23 // pred_region
          %s119 = ssub.s32 128, 128
          %120 = vsyncadd %s111, %s119
          %s121 = smul.addr %s16, 128
          %s122 = scalar_lea.hbm %s1, %s121
          %s124 = sshll.u32 %s114, 4
          %s125 = int_to_ptr.vmem [resolvable:$true] %s124
          %127 = dma.vmem_to_hbm [thread:$0]  %s125, 128, %s122, %s111
        $region32: #{tpu_custom_call.1} parent=23 // pred_fallthru
          _
      $region24: #{tpu_custom_call.1} parent=5 // pred_fallthru
        _
      %p128 = scmp.le.s32.totalorder 2, %s11
      // Predicated region
      $region33: #{tpu_custom_call.1} parent=5 // pred_check
        %p129 = pneg %p128
      $region34: #{tpu_custom_call.1} parent=5 // pred_check_branch
        %131 = sbr.rel (%p129) target = $region36
      $region35: #{tpu_custom_call.1} parent=5 // pred_region
        %s132 = ssub.s32 %s11, 2
        // Predicated region
        $region37: #{tpu_custom_call.1} parent=35 // pred_check
          %p133 = pneg %p61
        $region38: #{tpu_custom_call.1} parent=35 // pred_check_branch
          %135 = sbr.rel (%p133) target = $region40
        $region39: #{tpu_custom_call.1} parent=35 // pred_region
          %s136 = sand.u32 %s46, 1
          %s137 = scalar_lea.sflag [#allocation4], %s136
          %s138 = sand.u32 %s46, 1
          %s139 = smul.addr %s138, 8
          %s140 = scalar_lea.vmem [#allocation5], %s139
          %141 = dma.done %s137, 128
        $region40: #{tpu_custom_call.1} parent=35 // pred_fallthru
          _
      $region36: #{tpu_custom_call.1} parent=5 // pred_fallthru
        _
    $region6: #{tpu_custom_call.1} parent=1 // loop_footer
      %s15 = sadd.s32 1, %s11
    $region7: #{tpu_custom_call.1} parent=1 // loop_footer_branch
      %10 = sbr.rel target = $region3
    $region8: #{tpu_custom_call.1} parent=1 // loop_exit
      _
    %142 = vsyncpa [#allocation3], 1
    %s143 = scalar_lea.sflag [#allocation3], 1
    %144 = vsyncpa %s143, 1
    %145 = vsyncpa [#allocation4], 1
    %s146 = scalar_lea.sflag [#allocation4], 1
    %147 = vsyncpa %s146, 1

// kernel: tpu_custom_call.1
$region0: #{tpu_custom_call.1}
  #allocation0 [shape = 'u32[]', space=smem, size = 0x4, offset = 0x4, fixed_abs, tag = 'smem constant byte address 0x4 - core index']
  #allocation1 [shape = 'u32[144,128]{1,0:T(1,128)}', space=vmem, size = 0x12000, scoped, tag = 'internal scratch']
  %s0 = inlined_call_operand.hbm [shape: bf16[16,128], index: 0, kind: input, shape index: {}]
  %s1 = inlined_call_operand.hbm [shape: bf16[16,32], index: 1, kind: input, shape index: {}]
  %s2 = inlined_call_operand.hbm [shape: bf16[16,32], index: 2, kind: input, shape index: {}]
  %s3 = inlined_call_operand.hbm [shape: bf16[128,512], index: 3, kind: input, shape index: {}]
  %s4 = inlined_call_operand.hbm [shape: f32[1,128], index: 4, kind: input, shape index: {}]
  %s5 = inlined_call_operand.hbm [shape: bf16[16,128], index: 5, kind: output, shape index: {0}]
  %s6 = inlined_call_operand.hbm [shape: bf16[16,128], index: 6, kind: output, shape index: {1}]
  %s7 = inlined_call_operand.hbm [shape: bf16[16,128], index: 7, kind: output, shape index: {2}]
  %s8 = inlined_call_operand.hbm [shape: bf16[16,128], index: 8, kind: output, shape index: {3}]
  %9 = xla_tuple %s5, %s6, %s7, %s8
  %s10 = sld [smem:[#allocation0]]
  $region74: #{tpu_custom_call.1} parent=0
    _
  %s12 = ssub.s32 1, %s10
  %s13 = scalar_select 0, %s12, %s10
  $region1: #{tpu_custom_call.1} parent=0
    #allocation2 [shape = 'u8[4096]{0}', space=vmem, size = 0x1000, scoped, tag = 'input window, operand 0, single buffered']
    #allocation3 [shape = 's32[1]{0}', space=sflag, size = 0x4, scoped, tag = 'scoped memory for tpu_custom_call.1']
    #allocation4 [shape = 's32[1]{0}', space=sflag, size = 0x4, scoped, tag = 'scoped memory for tpu_custom_call.1']
    #allocation5 [shape = 'u8[4096]{0}', space=vmem, size = 0x1000, scoped, tag = 'input window, operand 1, single buffered']
    #allocation6 [shape = 's32[1]{0}', space=sflag, size = 0x4, scoped, tag = 'scoped memory for tpu_custom_call.1']
    #allocation7 [shape = 'u8[4096]{0}', space=vmem, size = 0x1000, scoped, tag = 'input window, operand 2, single buffered']
    #allocation8 [shape = 'u8[131072]{0}', space=vmem, size = 0x20000, scoped, tag = 'input window, operand 3, single buffered']
    #allocation9 [shape = 's32[1]{0}', space=sflag, size = 0x4, scoped, tag = 'scoped memory for tpu_custom_call.1']
    #allocation10 [shape = 'u8[512]{0}', space=vmem, size = 0x400, scoped, tag = 'input window, operand 4, single buffered']
    #allocation11 [shape = 'u8[4096]{0}', space=vmem, size = 0x1000, scoped, tag = 'output window, operand 0, single buffered']
    #allocation12 [shape = 'u8[4096]{0}', space=vmem, size = 0x1000, scoped, tag = 'output window, operand 1, single buffered']
    #allocation13 [shape = 's32[1]{0}', space=sflag, size = 0x4, scoped, tag = 'scoped memory for tpu_custom_call.1']
    #allocation14 [shape = 'u8[4096]{0}', space=vmem, size = 0x1000, scoped, tag = 'output window, operand 2, single buffered']
    #allocation15 [shape = 'u8[4096]{0}', space=vmem, size = 0x1000, scoped, tag = 'output window, operand 3, single buffered']
    #allocation16 [shape = 's32[1]{0}', space=sflag, size = 0x4, scoped, tag = 'scoped memory for tpu_custom_call.1']
    %14 = vsyncpa [#allocation3], 0
    %15 = vsyncpa [#allocation6], 0
    %16 = vsyncpa [#allocation9], 0
    %17 = vsyncpa [#allocation4], 0
    %18 = vsyncpa [#allocation13], 0
    %19 = vsyncpa [#allocation16], 0
    // Predicated region
    $region2: #{tpu_custom_call.1} parent=1 // pred_check
      _
    $region3: #{tpu_custom_call.1} parent=1 // pred_check_branch
      %21 = sbr.rel (0) target = $region5
    $region4: #{tpu_custom_call.1} parent=1 // pred_region
      %s23 = ssub.s32 128, 128
      %24 = vsyncadd [#allocation3], %s23
      %s25 = sshll.u32 [#allocation2], 4
      %s26 = int_to_ptr.vmem [resolvable:$true] %s25
      %31 = dma.hbm_to_vmem [thread:$0]  %s0, 128, %s26, [#allocation3], 64, 64, 4
    $region5: #{tpu_custom_call.1} parent=1 // pred_fallthru
      _
    // Predicated region
    $region6: #{tpu_custom_call.1} parent=1 // pred_check
      _
    $region7: #{tpu_custom_call.1} parent=1 // pred_check_branch
      %33 = sbr.rel (0) target = $region9
    $region8: #{tpu_custom_call.1} parent=1 // pred_region
      %s35 = ssub.s32 128, 128
      %36 = vsyncadd [#allocation6], %s35
      %s37 = sshll.u32 [#allocation5], 4
      %s38 = int_to_ptr.vmem [resolvable:$true] %s37
      %43 = dma.hbm_to_vmem [thread:$0]  %s1, 128, %s38, [#allocation6], 64, 64, 4
    $region9: #{tpu_custom_call.1} parent=1 // pred_fallthru
      _
    // Predicated region
    $region10: #{tpu_custom_call.1} parent=1 // pred_check
      _
    $region11: #{tpu_custom_call.1} parent=1 // pred_check_branch
      %45 = sbr.rel (0) target = $region13
    $region12: #{tpu_custom_call.1} parent=1 // pred_region
      %s47 = ssub.s32 128, 128
      %48 = vsyncadd [#allocation6], %s47
      %s49 = sshll.u32 [#allocation7], 4
      %s50 = int_to_ptr.vmem [resolvable:$true] %s49
      %55 = dma.hbm_to_vmem [thread:$0]  %s2, 128, %s50, [#allocation6], 64, 64, 4
    $region13: #{tpu_custom_call.1} parent=1 // pred_fallthru
      _
    // Predicated region
    $region14: #{tpu_custom_call.1} parent=1 // pred_check
      _
    $region15: #{tpu_custom_call.1} parent=1 // pred_check_branch
      %57 = sbr.rel (0) target = $region17
    $region16: #{tpu_custom_call.1} parent=1 // pred_region
      %s59 = ssub.s32 4096, 4096
      %60 = vsyncadd [#allocation9], %s59
      %s61 = sshll.u32 [#allocation8], 4
      %s62 = int_to_ptr.vmem [resolvable:$true] %s61
      %67 = dma.hbm_to_vmem [thread:$0]  %s3, 4096, %s62, [#allocation9], 256, 256, 16
    $region17: #{tpu_custom_call.1} parent=1 // pred_fallthru
      _
    // Predicated region
    $region18: #{tpu_custom_call.1} parent=1 // pred_check
      _
    $region19: #{tpu_custom_call.1} parent=1 // pred_check_branch
      %69 = sbr.rel (0) target = $region21
    $region20: #{tpu_custom_call.1} parent=1 // pred_region
      %s71 = ssub.s32 16, 16
      %72 = vsyncadd [#allocation9], %s71
      %s74 = sshll.u32 [#allocation10], 4
      %s75 = int_to_ptr.vmem [resolvable:$true] %s74
      %77 = dma.hbm_to_vmem [thread:$0]  %s4, 16, %s75, [#allocation9]
    $region21: #{tpu_custom_call.1} parent=1 // pred_fallthru
      _
    // Predicated region
    $region22: #{tpu_custom_call.1} parent=1 // pred_check
      _
    $region23: #{tpu_custom_call.1} parent=1 // pred_check_branch
      %79 = sbr.rel (0) target = $region25
    $region24: #{tpu_custom_call.1} parent=1 // pred_region
      %80 = dma.done [#allocation3], 128
    $region25: #{tpu_custom_call.1} parent=1 // pred_fallthru
      _
    // Predicated region
    $region26: #{tpu_custom_call.1} parent=1 // pred_check
      _
    $region27: #{tpu_custom_call.1} parent=1 // pred_check_branch
      %82 = sbr.rel (0) target = $region29
    $region28: #{tpu_custom_call.1} parent=1 // pred_region
      %83 = dma.done [#allocation6], 128
    $region29: #{tpu_custom_call.1} parent=1 // pred_fallthru
      _
    // Predicated region
    $region30: #{tpu_custom_call.1} parent=1 // pred_check
      _
    $region31: #{tpu_custom_call.1} parent=1 // pred_check_branch
      %85 = sbr.rel (0) target = $region33
    $region32: #{tpu_custom_call.1} parent=1 // pred_region
      %86 = dma.done [#allocation6], 128
    $region33: #{tpu_custom_call.1} parent=1 // pred_fallthru
      _
    // Predicated region
    $region34: #{tpu_custom_call.1} parent=1 // pred_check
      _
    $region35: #{tpu_custom_call.1} parent=1 // pred_check_branch
      %88 = sbr.rel (0) target = $region37
    $region36: #{tpu_custom_call.1} parent=1 // pred_region
      %89 = dma.done [#allocation9], 4096
    $region37: #{tpu_custom_call.1} parent=1 // pred_fallthru
      _
    // Predicated region
    $region38: #{tpu_custom_call.1} parent=1 // pred_check
      _
    $region39: #{tpu_custom_call.1} parent=1 // pred_check_branch
      %91 = sbr.rel (0) target = $region41
    $region40: #{tpu_custom_call.1} parent=1 // pred_region
      %92 = dma.done [#allocation9], 16
    $region41: #{tpu_custom_call.1} parent=1 // pred_fallthru
      _
    %v94 = vld [vmem:[#allocation2] sm:$0xf]
    %v95 = vld [vmem:[#allocation2 + $0x4] sm:$0xf]
    %v96 = vld [vmem:[#allocation8] sm:$0xff]
    %v97 = vld [vmem:[#allocation8 + $0x8] sm:$0xff]
    %v98 = vld [vmem:[#allocation8 + $0x10] sm:$0xff]
    %v99 = vld [vmem:[#allocation8 + $0x18] sm:$0xff]
    %v100 = vld [vmem:[#allocation8 + $0x20] sm:$0xff]
    %v101 = vld [vmem:[#allocation8 + $0x28] sm:$0xff]
    %v102 = vld [vmem:[#allocation8 + $0x30] sm:$0xff]
    %v103 = vld [vmem:[#allocation8 + $0x38] sm:$0xff]
    %v104 = vld [vmem:[#allocation8 + $0x40] sm:$0xff]
    %v105 = vld [vmem:[#allocation8 + $0x48] sm:$0xff]
    %v106 = vld [vmem:[#allocation8 + $0x50] sm:$0xff]
    %v107 = vld [vmem:[#allocation8 + $0x58] sm:$0xff]
    %v108 = vld [vmem:[#allocation8 + $0x60] sm:$0xff]
    %v109 = vld [vmem:[#allocation8 + $0x68] sm:$0xff]
    %v110 = vld [vmem:[#allocation8 + $0x70] sm:$0xff]
    %v111 = vld [vmem:[#allocation8 + $0x78] sm:$0xff]
    %v112 = vld [vmem:[#allocation8 + $0x80] sm:$0xff]
    %v113 = vld [vmem:[#allocation8 + $0x88] sm:$0xff]
    %v114 = vld [vmem:[#allocation8 + $0x90] sm:$0xff]
    %v115 = vld [vmem:[#allocation8 + $0x98] sm:$0xff]
    %v116 = vld [vmem:[#allocation8 + $0xa0] sm:$0xff]
    %v117 = vld [vmem:[#allocation8 + $0xa8] sm:$0xff]
    %v118 = vld [vmem:[#allocation8 + $0xb0] sm:$0xff]
    %v119 = vld [vmem:[#allocation8 + $0xb8] sm:$0xff]
    %v120 = vld [vmem:[#allocation8 + $0xc0] sm:$0xff]
    %v121 = vld [vmem:[#allocation8 + $0xc8] sm:$0xff]
    %v122 = vld [vmem:[#allocation8 + $0xd0] sm:$0xff]
    %v123 = vld [vmem:[#allocation8 + $0xd8] sm:$0xff]
    %v124 = vld [vmem:[#allocation8 + $0xe0] sm:$0xff]
    %v125 = vld [vmem:[#allocation8 + $0xe8] sm:$0xff]
    %v126 = vld [vmem:[#allocation8 + $0xf0] sm:$0xff]
    %v127 = vld [vmem:[#allocation8 + $0xf8] sm:$0xff]
    %v130 = vunpack.c.l.b16 %v94
    %v131 = vunpack.c.l.b16 %v95
    %v132 = vpack.c.b16 %v131, %v130
    %v166 = vunpack.c.l.b16 %v96
    %v167 = vunpack.c.h.b16 %v96
    %v168 = vunpack.c.l.b16 %v97
    %v169 = vunpack.c.h.b16 %v97
    %v170 = vunpack.c.l.b16 %v98
    %v171 = vunpack.c.h.b16 %v98
    %v172 = vunpack.c.l.b16 %v99
    %v173 = vunpack.c.h.b16 %v99
    %v174 = vunpack.c.l.b16 %v100
    %v175 = vunpack.c.h.b16 %v100
    %v176 = vunpack.c.l.b16 %v101
    %v177 = vunpack.c.h.b16 %v101
    %v178 = vunpack.c.l.b16 %v102
    %v179 = vunpack.c.h.b16 %v102
    %v180 = vunpack.c.l.b16 %v103
    %v181 = vunpack.c.h.b16 %v103
    %v182 = vunpack.c.l.b16 %v104
    %v183 = vunpack.c.h.b16 %v104
    %v184 = vunpack.c.l.b16 %v105
    %v185 = vunpack.c.h.b16 %v105
    %v186 = vunpack.c.l.b16 %v106
    %v187 = vunpack.c.h.b16 %v106
    %v188 = vunpack.c.l.b16 %v107
    %v189 = vunpack.c.h.b16 %v107
    %v190 = vunpack.c.l.b16 %v108
    %v191 = vunpack.c.h.b16 %v108
    %v192 = vunpack.c.l.b16 %v109
    %v193 = vunpack.c.h.b16 %v109
    %v194 = vunpack.c.l.b16 %v110
    %v195 = vunpack.c.h.b16 %v110
    %v196 = vunpack.c.l.b16 %v111
    %v197 = vunpack.c.h.b16 %v111
    %v198 = vunpack.c.l.b16 %v112
    %v199 = vunpack.c.h.b16 %v112
    %v200 = vunpack.c.l.b16 %v113
    %v201 = vunpack.c.h.b16 %v113
    %v202 = vunpack.c.l.b16 %v114
    %v203 = vunpack.c.h.b16 %v114
    %v204 = vunpack.c.l.b16 %v115
    %v205 = vunpack.c.h.b16 %v115
    %v206 = vunpack.c.l.b16 %v116
    %v207 = vunpack.c.h.b16 %v116
    %v208 = vunpack.c.l.b16 %v117
    %v209 = vunpack.c.h.b16 %v117
    %v210 = vunpack.c.l.b16 %v118
    %v211 = vunpack.c.h.b16 %v118
    %v212 = vunpack.c.l.b16 %v119
    %v213 = vunpack.c.h.b16 %v119
    %v214 = vunpack.c.l.b16 %v120
    %v215 = vunpack.c.h.b16 %v120
    %v216 = vunpack.c.l.b16 %v121
    %v217 = vunpack.c.h.b16 %v121
    %v218 = vunpack.c.l.b16 %v122
    %v219 = vunpack.c.h.b16 %v122
    %v220 = vunpack.c.l.b16 %v123
    %v221 = vunpack.c.h.b16 %v123
    %v222 = vunpack.c.l.b16 %v124
    %v223 = vunpack.c.h.b16 %v124
    %v224 = vunpack.c.l.b16 %v125
    %v225 = vunpack.c.h.b16 %v125
    %v226 = vunpack.c.l.b16 %v126
    %v227 = vunpack.c.h.b16 %v126
    %v228 = vunpack.c.l.b16 %v127
    %v229 = vunpack.c.h.b16 %v127
    %v230 = vpack.c.b16 %v170, %v166
    %v231 = vpack.c.b16 %v171, %v167
    %v232 = vpack.c.b16 %v172, %v168
    %v233 = vpack.c.b16 %v173, %v169
    %v234 = vpack.c.b16 %v178, %v174
    %v235 = vpack.c.b16 %v179, %v175
    %v236 = vpack.c.b16 %v180, %v176
    %v237 = vpack.c.b16 %v181, %v177
    %v238 = vpack.c.b16 %v186, %v182
    %v239 = vpack.c.b16 %v187, %v183
    %v240 = vpack.c.b16 %v188, %v184
    %v241 = vpack.c.b16 %v189, %v185
    %v242 = vpack.c.b16 %v194, %v190
    %v243 = vpack.c.b16 %v195, %v191
    %v244 = vpack.c.b16 %v196, %v192
    %v245 = vpack.c.b16 %v197, %v193
    %v246 = vpack.c.b16 %v202, %v198
    %v247 = vpack.c.b16 %v203, %v199
    %v248 = vpack.c.b16 %v204, %v200
    %v249 = vpack.c.b16 %v205, %v201
    %v250 = vpack.c.b16 %v210, %v206
    %v251 = vpack.c.b16 %v211, %v207
    %v252 = vpack.c.b16 %v212, %v208
    %v253 = vpack.c.b16 %v213, %v209
    %v254 = vpack.c.b16 %v218, %v214
    %v255 = vpack.c.b16 %v219, %v215
    %v256 = vpack.c.b16 %v220, %v216
    %v257 = vpack.c.b16 %v221, %v217
    %v258 = vpack.c.b16 %v226, %v222
    %v259 = vpack.c.b16 %v227, %v223
    %v260 = vpack.c.b16 %v228, %v224
    %v261 = vpack.c.b16 %v229, %v225
    %294 = vmatprep.subr.bf16.mxu0 %v231
    %295 = vmatpush1.bf16.msra.mxu0 %v230
    %296 = vmatprep.subr.bf16.mxu0 %v235
    %297 = vmatpush1.bf16.msra.mxu0 %v234
    %298 = vmatprep.subr.bf16.mxu0 %v239
    %299 = vmatpush1.bf16.msra.mxu0 %v238
    %300 = vmatprep.subr.bf16.mxu0 %v243
    %301 = vmatpush1.bf16.msra.mxu0 %v242
    %302 = vmatprep.subr.bf16.mxu0 %v247
    %303 = vmatpush1.bf16.msra.mxu0 %v246
    %304 = vmatprep.subr.bf16.mxu0 %v251
    %305 = vmatpush1.bf16.msra.mxu0 %v250
    %306 = vmatprep.subr.bf16.mxu0 %v255
    %307 = vmatpush1.bf16.msra.mxu0 %v254
    %308 = vmatprep.subr.bf16.mxu0 %v259
    %309 = vmatpush1.bf16.msra.mxu0 %v258
    %310 = vmatprep.subr.bf16.mxu0 0
    %311 = vmatpush1.bf16.msra.mxu0 0
    %312 = vmatprep.subr.bf16.mxu0 0
    %313 = vmatpush1.bf16.msra.mxu0 0
    %314 = vmatprep.subr.bf16.mxu0 0
    %315 = vmatpush1.bf16.msra.mxu0 0
    %316 = vmatprep.subr.bf16.mxu0 0
    %317 = vmatpush1.bf16.msra.mxu0 0
    %318 = vmatprep.subr.bf16.mxu0 0
    %319 = vmatpush1.bf16.msra.mxu0 0
    %320 = vmatprep.subr.bf16.mxu0 0
    %321 = vmatpush1.bf16.msra.mxu0 0
    %322 = vmatprep.subr.bf16.mxu0 0
    %323 = vmatpush1.bf16.msra.mxu0 0
    %324 = vmatprep.subr.bf16.mxu0 0
    %325 = vmatpush1.bf16.msra.mxu0 0
    %326 = vmatprep.mubr.bf16.mxu0 0
    %327 = vmatmul.mubr.bf16.gmra.mrb[0].mxu0 %v132
    %v328 = vpop.f32.mrb[0].mxu0
    %v329 = vadd.f32 0.0, %v328
    %v330 = vpop.f32.mrb[0].mxu0
    %v331 = vadd.f32 0.0, %v330
    %v332 = vpop.f32.mrb[0].mxu0
    %v333 = vadd.f32 0.0, %v332
    %v334 = vpop.f32.mrb[0].mxu0
    %v335 = vadd.f32 0.0, %v334
    %336 = vdwg.mxu0
    %337 = vmatprep.subr.bf16.mxu0 %v233
    %338 = vmatpush1.bf16.msra.mxu0 %v232
    %339 = vmatprep.subr.bf16.mxu0 %v237
    %340 = vmatpush1.bf16.msra.mxu0 %v236
    %341 = vmatprep.subr.bf16.mxu0 %v241
    %342 = vmatpush1.bf16.msra.mxu0 %v240
    %343 = vmatprep.subr.bf16.mxu0 %v245
    %344 = vmatpush1.bf16.msra.mxu0 %v244
    %345 = vmatprep.subr.bf16.mxu0 %v249
    %346 = vmatpush1.bf16.msra.mxu0 %v248
    %347 = vmatprep.subr.bf16.mxu0 %v253
    %348 = vmatpush1.bf16.msra.mxu0 %v252
    %349 = vmatprep.subr.bf16.mxu0 %v257
    %350 = vmatpush1.bf16.msra.mxu0 %v256
    %351 = vmatprep.subr.bf16.mxu0 %v261
    %352 = vmatpush1.bf16.msra.mxu0 %v260
    %353 = vmatprep.subr.bf16.mxu0 0
    %354 = vmatpush1.bf16.msra.mxu0 0
    %355 = vmatprep.subr.bf16.mxu0 0
    %356 = vmatpush1.bf16.msra.mxu0 0
    %357 = vmatprep.subr.bf16.mxu0 0
    %358 = vmatpush1.bf16.msra.mxu0 0
    %359 = vmatprep.subr.bf16.mxu0 0
    %360 = vmatpush1.bf16.msra.mxu0 0
    %361 = vmatprep.subr.bf16.mxu0 0
    %362 = vmatpush1.bf16.msra.mxu0 0
    %363 = vmatprep.subr.bf16.mxu0 0
    %364 = vmatpush1.bf16.msra.mxu0 0
    %365 = vmatprep.subr.bf16.mxu0 0
    %366 = vmatpush1.bf16.msra.mxu0 0
    %367 = vmatprep.subr.bf16.mxu0 0
    %368 = vmatpush1.bf16.msra.mxu0 0
    %369 = vmatprep.mubr.bf16.mxu0 0
    %370 = vmatmul.mubr.bf16.gmra.mrb[0].mxu0 %v132
    %v371 = vpop.f32.mrb[0].mxu0
    %v372 = vadd.f32 0.0, %v371
    %v373 = vpop.f32.mrb[0].mxu0
    %v374 = vadd.f32 0.0, %v373
    %v375 = vpop.f32.mrb[0].mxu0
    %v376 = vadd.f32 0.0, %v375
    %v377 = vpop.f32.mrb[0].mxu0
    %v378 = vadd.f32 0.0, %v377
    %379 = vdwg.mxu0
    %v380 = vld [vmem:[#allocation5] sm:$0xf]
    %v381 = vld [vmem:[#allocation5 + $0x4] sm:$0xf]
    %v382 = vunpack.c.l.bf16 %v380
    %v383 = vunpack.c.l.bf16 %v381
    %v384 = vld [vmem:[#allocation7] sm:$0xf]
    %v385 = vld [vmem:[#allocation7 + $0x4] sm:$0xf]
    %v386 = vunpack.c.l.bf16 %v384
    %v387 = vunpack.c.l.bf16 %v385
    %390 = vrot.lane.b32.xlu0 %v382, 32
    %v391 = vpop.permute.xlu0 %390
    %392 = vrot.lane.b32.xlu0 %v383, 32
    %v393 = vpop.permute.xlu0 %392
    %396 = vrot.lane.b32.xlu0 %v382, 64
    %v397 = vpop.permute.xlu0 %396
    %398 = vrot.lane.b32.xlu0 %v383, 64
    %v399 = vpop.permute.xlu0 %398
    %402 = vrot.lane.b32.xlu0 %v382, 96
    %v403 = vpop.permute.xlu0 %402
    %404 = vrot.lane.b32.xlu0 %v383, 96
    %v405 = vpop.permute.xlu0 %404
    %vm408 = vcmask 261120
    %v409 = vsel %vm408, %v382, %v391
    %v410 = vsel %vm408, %v383, %v393
    %vm411 = vcmask 523264
    %v412 = vsel %vm411, %v409, %v397
    %v413 = vsel %vm411, %v410, %v399
    %vm414 = vcmask 785408
    %v415 = vsel %vm414, %v412, %v403
    %v416 = vsel %vm414, %v413, %v405
    %419 = vrot.lane.b32.xlu0 %v386, 32
    %v420 = vpop.permute.xlu0 %419
    %421 = vrot.lane.b32.xlu0 %v387, 32
    %v422 = vpop.permute.xlu0 %421
    %425 = vrot.lane.b32.xlu0 %v386, 64
    %v426 = vpop.permute.xlu0 %425
    %427 = vrot.lane.b32.xlu0 %v387, 64
    %v428 = vpop.permute.xlu0 %427
    %431 = vrot.lane.b32.xlu0 %v386, 96
    %v432 = vpop.permute.xlu0 %431
    %433 = vrot.lane.b32.xlu0 %v387, 96
    %v434 = vpop.permute.xlu0 %433
    %v437 = vsel %vm408, %v386, %v420
    %v438 = vsel %vm408, %v387, %v422
    %v439 = vsel %vm411, %v437, %v426
    %v440 = vsel %vm411, %v438, %v428
    %v441 = vsel %vm414, %v439, %v432
    %v442 = vsel %vm414, %v440, %v434
    %v443 = vlaneseq
    %v444 = vand.u32 %v443, 127
    %vm445 = vcmp.lt.s32.totalorder %v444, 0
    %v446 = vsub.s32 0, %v444
    %v447 = vsel %vm445, %v446, %v444
    %v448 = vshrl.u32 %v447, 1
    %v449 = vand.u32 %v447, 1
    %v450 = vsub.s32 0, %v449
    %v451 = vsel %vm445, %v450, %v449
    %vm452 = vcmp.ne.s32.totalorder %v451, 0
    %vm453 = vcmp.lt.s32.totalorder %v451, 0
    %vm454 = vmand %vm453, %vm452
    %v455 = vadd.s32 %v451, 2
    %v456 = vsel %vm454, %v455, %v451
    %vm457 = vcmp.eq.s32.totalorder %v456, 0
    %v458 = vld [vmem:[#allocation10] sm:$0x1]
    %v460 = vlaneseq
    %v461 = vshrl.u32 %v460, 7
    %v462 = vsub.s32 0, %v461
    %v463 = vrot.slane %v458, %v462
    %v465 = vadd.f32 %v374, %v463
    %v466 = vadd.f32 %v378, %v463
    %467 = vrot.lane.b32.xlu0 %v329, 127
    %v468 = vpop.permute.xlu0 %467
    %469 = vrot.lane.b32.xlu0 %v333, 127
    %v470 = vpop.permute.xlu0 %469
    %471 = vrot.lane.b32.xlu0 %v329, 1
    %v472 = vpop.permute.xlu0 %471
    %473 = vrot.lane.b32.xlu0 %v333, 1
    %v474 = vpop.permute.xlu0 %473
    %v475 = vsel %vm457, %v468, %v472
    %v476 = vsel %vm457, %v470, %v474
    %v477 = vmul.f32 %v329, %v415
    %v478 = vmul.f32 %v333, %v416
    %v479 = vmul.f32 %v475, %v441
    %v480 = vmul.f32 %v476, %v442
    %v481 = vadd.f32 %v477, %v479
    %v482 = vadd.f32 %v478, %v480
    %v483 = vpack.c.bf16 %v482, %v481
    %v485 = vunpack.c.l.b16 %v483
    %v486 = vunpack.c.h.b16 %v483
    %v487 = vpack.c.b16 %v485, %v485
    %v488 = vpack.c.b16 %v486, %v486
    %491 = vst [vmem:[#allocation11] sm:$0xf] %v487
    %492 = vst [vmem:[#allocation11 + $0x4] sm:$0xf] %v488
    %493 = vrot.lane.b32.xlu0 %v331, 127
    %v494 = vpop.permute.xlu0 %493
    %495 = vrot.lane.b32.xlu0 %v335, 127
    %v496 = vpop.permute.xlu0 %495
    %497 = vrot.lane.b32.xlu0 %v331, 1
    %v498 = vpop.permute.xlu0 %497
    %499 = vrot.lane.b32.xlu0 %v335, 1
    %v500 = vpop.permute.xlu0 %499
    %v501 = vsel %vm457, %v494, %v498
    %v502 = vsel %vm457, %v496, %v500
    %v503 = vmul.f32 %v331, %v415
    %v504 = vmul.f32 %v335, %v416
    %v505 = vmul.f32 %v501, %v441
    %v506 = vmul.f32 %v502, %v442
    %v507 = vadd.f32 %v503, %v505
    %v508 = vadd.f32 %v504, %v506
    %v509 = vpack.c.bf16 %v508, %v507
    %v511 = vunpack.c.l.b16 %v509
    %v512 = vunpack.c.h.b16 %v509
    %v513 = vpack.c.b16 %v511, %v511
    %v514 = vpack.c.b16 %v512, %v512
    %517 = vst [vmem:[#allocation12] sm:$0xf] %v513
    %518 = vst [vmem:[#allocation12 + $0x4] sm:$0xf] %v514
    %v519 = vpack.c.bf16 %v376, %v372
    %v521 = vunpack.c.l.b16 %v519
    %v522 = vunpack.c.h.b16 %v519
    %v523 = vpack.c.b16 %v521, %v521
    %v524 = vpack.c.b16 %v522, %v522
    %527 = vst [vmem:[#allocation14] sm:$0xf] %v523
    %528 = vst [vmem:[#allocation14 + $0x4] sm:$0xf] %v524
    %v529 = vxor.u32 %v465, 2147483648
    %v530 = vxor.u32 %v466, 2147483648
    %v531 = vmul.f32 %v529, 1.442695
    %v532 = vpow.pop %v531
    %v533 = vmul.f32 %v530, 1.442695
    %v534 = vpow.pop %v533
    %v535 = vadd.f32 %v532, 1.0
    %v536 = vadd.f32 %v534, 1.0
    %v537 = vrcp.pop %v535
    %v538 = vmul.f32 1.0, %v537
    %v539 = vrcp.pop %v536
    %v540 = vmul.f32 1.0, %v539
    %v541 = vpack.c.bf16 %v540, %v538
    %v543 = vunpack.c.l.b16 %v541
    %v544 = vunpack.c.h.b16 %v541
    %v545 = vpack.c.b16 %v543, %v543
    %v546 = vpack.c.b16 %v544, %v544
    %549 = vst [vmem:[#allocation15] sm:$0xf] %v545
    %550 = vst [vmem:[#allocation15 + $0x4] sm:$0xf] %v546
    // Predicated region
    $region42: #{tpu_custom_call.1} parent=1 // pred_check
      _
    $region43: #{tpu_custom_call.1} parent=1 // pred_check_branch
      %552 = sbr.rel (0) target = $region45
    $region44: #{tpu_custom_call.1} parent=1 // pred_region
      %s554 = ssub.s32 128, 128
      %555 = vsyncadd [#allocation4], %s554
      %s556 = sshll.u32 [#allocation11], 4
      %s557 = int_to_ptr.vmem [resolvable:$true] %s556
      %562 = dma.vmem_to_hbm [thread:$0]  %s557, 128, %s5, [#allocation4], 64, 64, 4
    $region45: #{tpu_custom_call.1} parent=1 // pred_fallthru
      _
    // Predicated region
    $region46: #{tpu_custom_call.1} parent=1 // pred_check
      _
    $region47: #{tpu_custom_call.1} parent=1 // pred_check_branch
      %564 = sbr.rel (0) target = $region49
    $region48: #{tpu_custom_call.1} parent=1 // pred_region
      %s566 = ssub.s32 128, 128
      %567 = vsyncadd [#allocation13], %s566
      %s568 = sshll.u32 [#allocation12], 4
      %s569 = int_to_ptr.vmem [resolvable:$true] %s568
      %574 = dma.vmem_to_hbm [thread:$0]  %s569, 128, %s6, [#allocation13], 64, 64, 4
    $region49: #{tpu_custom_call.1} parent=1 // pred_fallthru
      _
    // Predicated region
    $region50: #{tpu_custom_call.1} parent=1 // pred_check
      _
    $region51: #{tpu_custom_call.1} parent=1 // pred_check_branch
      %576 = sbr.rel (0) target = $region53
    $region52: #{tpu_custom_call.1} parent=1 // pred_region
      %s578 = ssub.s32 128, 128
      %579 = vsyncadd [#allocation13], %s578
      %s580 = sshll.u32 [#allocation14], 4
      %s581 = int_to_ptr.vmem [resolvable:$true] %s580
      %586 = dma.vmem_to_hbm [thread:$0]  %s581, 128, %s7, [#allocation13], 64, 64, 4
    $region53: #{tpu_custom_call.1} parent=1 // pred_fallthru
      _
    // Predicated region
    $region54: #{tpu_custom_call.1} parent=1 // pred_check
      _
    $region55: #{tpu_custom_call.1} parent=1 // pred_check_branch
      %588 = sbr.rel (0) target = $region57
    $region56: #{tpu_custom_call.1} parent=1 // pred_region
      %s590 = ssub.s32 128, 128
      %591 = vsyncadd [#allocation16], %s590
      %s592 = sshll.u32 [#allocation15], 4
      %s593 = int_to_ptr.vmem [resolvable:$true] %s592
      %598 = dma.vmem_to_hbm [thread:$0]  %s593, 128, %s8, [#allocation16], 64, 64, 4
    $region57: #{tpu_custom_call.1} parent=1 // pred_fallthru
      _
    // Predicated region
    $region58: #{tpu_custom_call.1} parent=1 // pred_check
      _
    $region59: #{tpu_custom_call.1} parent=1 // pred_check_branch
      %600 = sbr.rel (0) target = $region61
    $region60: #{tpu_custom_call.1} parent=1 // pred_region
      %601 = dma.done [#allocation4], 128
    $region61: #{tpu_custom_call.1} parent=1 // pred_fallthru
      _
    // Predicated region
    $region62: #{tpu_custom_call.1} parent=1 // pred_check
      _
    $region63: #{tpu_custom_call.1} parent=1 // pred_check_branch
      %603 = sbr.rel (0) target = $region65
    $region64: #{tpu_custom_call.1} parent=1 // pred_region
      %604 = dma.done [#allocation13], 128
    $region65: #{tpu_custom_call.1} parent=1 // pred_fallthru
      _
    // Predicated region
    $region66: #{tpu_custom_call.1} parent=1 // pred_check
      _
    $region67: #{tpu_custom_call.1} parent=1 // pred_check_branch
      %606 = sbr.rel (0) target = $region69
    $region68: #{tpu_custom_call.1} parent=1 // pred_region
      %607 = dma.done [#allocation13], 128
    $region69: #{tpu_custom_call.1} parent=1 // pred_fallthru
      _
    // Predicated region
    $region70: #{tpu_custom_call.1} parent=1 // pred_check
      _
    $region71: #{tpu_custom_call.1} parent=1 // pred_check_branch
      %609 = sbr.rel (0) target = $region73
    $region72: #{tpu_custom_call.1} parent=1 // pred_region
      %610 = dma.done [#allocation16], 128
    $region73: #{tpu_custom_call.1} parent=1 // pred_fallthru
      _
    %611 = vsyncpa [#allocation3], 1
    %612 = vsyncpa [#allocation6], 1
    %613 = vsyncpa [#allocation9], 1
    %614 = vsyncpa [#allocation4], 1
    %615 = vsyncpa [#allocation13], 1
    %616 = vsyncpa [#allocation16], 1

</llo_original>
